<compile_context>
chip_gen: v5e
topology: v5e:2x2
jax: 0.10.0
libtpu: 0.0.40
codegen_flags: <defaults>
</compile_context>

<pallas_src>
import functools

import jax
import jax.numpy as jnp
import numpy as np
from jax import lax
from jax.experimental import pallas as pl
from jax.experimental.pallas import tpu as pltpu


def _round_up(n, m):
    return ((n + m - 1) // m) * m


def attblock_kernel(w_ref, b_ref, x_ref, pooled_ref, att_ref, cla_ref, *,
                    activation, block_b, c_out, compute_dtype):
    """One grid step processes `block_b` batch rows.

    w_ref      : (2*Cp, C_in)          fused [att; cla] 1x1-conv weights (bf16)
    b_ref      : (2*Cp, 1)             fused biases (f32)
    x_ref      : (block_b, C_in, T)    input block (f32; cast in-kernel)
    pooled_ref : (block_b, C_out, 1)   pooled output (f32)
    att_ref    : (block_b, C_out, T)   softmax attention (out_dtype)
    cla_ref    : (block_b, C_out, T)   (optionally sigmoided) logits (out_dtype)
    """
    cp = w_ref.shape[0] // 2          # sublane-aligned per-branch channel count

    w = w_ref[...]                    # (2Cp, C_in) compute_dtype
    b = b_ref[...]                    # (2Cp, 1)    f32

    def body(bi):
        # In-kernel bf16 cast (VPU, hidden under the MXU); x arrives f32.
        x_b = x_ref[bi].astype(compute_dtype)                     # (C_in, T)

        # Both 1x1 convs fused into one MXU matmul, f32 accumulation.
        logits = jnp.dot(w, x_b, preferred_element_type=jnp.float32) + b

        # Cp is 8-aligned, so the cla slice offset is sublane-aligned (no relayout).
        att_logits = jnp.clip(logits[:cp, :], -10.0, 10.0)        # (Cp, T)
        cla_logits = logits[cp:, :]                                # (Cp, T)

        # Softmax over time (lanes), f32 throughout; reciprocal on the EUP.
        m = jnp.max(att_logits, axis=-1, keepdims=True)
        e = jnp.exp(att_logits - m)
        s = jnp.sum(e, axis=-1, keepdims=True)
        norm_att = e * pl.reciprocal(s, approx=True)

        if activation == 'sigmoid':
            cla = jax.nn.sigmoid(cla_logits)
        else:                                                      # 'linear'
            cla = cla_logits

        # Prefix slices (offset 0) keep stores relayout-free; padded channel
        # rows (C_out..Cp) are simply never written.
        att_ref[bi] = norm_att[:c_out, :].astype(att_ref.dtype)
        cla_ref[bi] = cla[:c_out, :].astype(cla_ref.dtype)

        # pooled[o] = sum_t norm_att[o,t]*cla[o,t]; exact-f32 XLU lane reduce.
        prod = norm_att * cla                                      # (Cp, T) f32
        ps = jnp.sum(prod, axis=-1, keepdims=True)[:c_out, :]      # (C_out, 1)
        pooled_ref[bi] = ps.astype(pooled_ref.dtype)

    if block_b == 1:
        body(0)
    else:
        def loop_body(bi, carry):
            body(bi)
            return carry
        lax.fori_loop(0, block_b, loop_body, 0)


def att_block(x, w_att, b_att, w_cla, b_cla, *, activation='linear',
              compute_dtype=jnp.bfloat16, out_dtype=jnp.float32, block_b=None):
    """x: (B, C_in, T) f32. Conv1d(k=1) weights: (C_out, C_in); biases (C_out, 1)."""
    if activation not in ('linear', 'sigmoid'):
        raise ValueError(f"unsupported activation: {activation}")

    B, C_in, T = x.shape
    C_out = w_att.shape[0]
    Cp = _round_up(C_out, 8)          # sublane-align the att/cla split point

    b_att = jnp.reshape(b_att, (C_out, 1))
    b_cla = jnp.reshape(b_cla, (C_out, 1))

    def pad_rows(a):
        return jnp.pad(a, ((0, Cp - C_out), (0, 0))) if Cp != C_out else a

    # Fuse both 1x1 convs into one (2*Cp, C_in) weight -> single MXU matmul.
    # (Weights/biases are tiny; this wrapper work is negligible.)
    w_fused = jnp.concatenate([pad_rows(w_att), pad_rows(w_cla)],
                              axis=0).astype(compute_dtype)
    b_fused = jnp.concatenate([pad_rows(b_att), pad_rows(b_cla)],
                              axis=0).astype(jnp.float32)

    out_isize = jnp.dtype(out_dtype).itemsize
    cd_isize = jnp.dtype(compute_dtype).itemsize

    def step_bytes(bt):
        x_b = bt * C_in * T * 4                        # f32 input block
        o_b = 2 * bt * C_out * T * out_isize           # att + cla blocks
        p_b = bt * C_out * 4                           # pooled block
        pipelined = 2 * (x_b + o_b + p_b)              # double buffering
        # Per-row in-kernel temporaries (logits/e/norm_att/cla/prod f32 + bf16 x row).
        interm = 6 * Cp * T * 4 + C_in * T * cd_isize
        return pipelined + interm

    try:
        vmem_cap = int(pltpu.get_tpu_info().vmem_capacity_bytes)
    except Exception:
        vmem_cap = 64 * 1024 * 1024                    # conservative: v7x per-TC

    # ~25 MiB block budget on v7x, ~51 MiB on v5e/v6e (128 MiB VMEM).
    budget = max(16 * 1024 * 1024, (2 * vmem_cap) // 5)

    if block_b is None:
        block_b = 1
        for bt in range(1, min(B, 8) + 1):
            if B % bt != 0:
                continue
            if B > 1 and B // bt < 2:
                continue                               # keep >=2 grid steps (v7x megacore)
            if step_bytes(bt) <= budget:
                block_b = bt
    assert B % block_b == 0
    nb = B // block_b

    w_bytes = 2 * (w_fused.size * cd_isize + b_fused.size * 4)
    need = step_bytes(block_b) + w_bytes + (4 << 20)   # headroom for Mosaic scratch
    vmem_limit = int(min(max(32 * 1024 * 1024, need), (3 * vmem_cap) // 4))

    kernel = functools.partial(attblock_kernel, activation=activation,
                               block_b=block_b, c_out=C_out,
                               compute_dtype=compute_dtype)

    out_shapes = (
        jax.ShapeDtypeStruct((B, C_out, 1), jnp.float32),   # pooled (tiny)
        jax.ShapeDtypeStruct((B, C_out, T), out_dtype),     # norm_att (unpadded)
        jax.ShapeDtypeStruct((B, C_out, T), out_dtype),     # cla (unpadded)
    )

    pooled, norm_att, cla = pl.pallas_call(
        kernel,
        out_shape=out_shapes,
        grid=(nb,),
        in_specs=[
            pl.BlockSpec((2 * Cp, C_in), lambda g: (0, 0)),          # fused weights
            pl.BlockSpec((2 * Cp, 1), lambda g: (0, 0)),             # fused biases
            pl.BlockSpec((block_b, C_in, T), lambda g: (g, 0, 0)),   # x (full C_in, T)
        ],
        out_specs=(
            pl.BlockSpec((block_b, C_out, 1), lambda g: (g, 0, 0)),
            pl.BlockSpec((block_b, C_out, T), lambda g: (g, 0, 0)),
            pl.BlockSpec((block_b, C_out, T), lambda g: (g, 0, 0)),
        ),
        compiler_params=pltpu.CompilerParams(
            dimension_semantics=("parallel",),
            vmem_limit_bytes=vmem_limit),
    )(w_fused, b_fused, x)

    return jnp.squeeze(pooled, axis=-1), norm_att, cla


def att_block_reference(x, w_att, b_att, w_cla, b_cla, *, activation='linear'):
    """Pure-JAX reference mirroring the PyTorch forward."""
    hi = lax.Precision.HIGHEST
    att = jnp.einsum('oi,bit->bot', w_att, x, precision=hi) + b_att[None, :, :]
    norm_att = jax.nn.softmax(jnp.clip(att, -10.0, 10.0), axis=-1)
    cla = jnp.einsum('oi,bit->bot', w_cla, x, precision=hi) + b_cla[None, :, :]
    if activation == 'sigmoid':
        cla = jax.nn.sigmoid(cla)
    pooled = jnp.sum(norm_att * cla, axis=-1)
    return pooled, norm_att, cla


if __name__ == "__main__":
    key = jax.random.PRNGKey(0)
    kx, kwa, kba, kwc, kbc = jax.random.split(key, 5)

    def make_inputs(B, C_IN, C_OUT, T):
        x = jax.random.normal(kx, (B, C_IN, T), dtype=jnp.float32)
        # Conv1d(kernel_size=1) weights: torch (C_out, C_in, 1) -> (C_out, C_in).
        w_att = jax.random.normal(kwa, (C_OUT, C_IN), dtype=jnp.float32) * 0.1
        b_att = jax.random.normal(kba, (C_OUT, 1), dtype=jnp.float32) * 0.1
        w_cla = jax.random.normal(kwc, (C_OUT, C_IN), dtype=jnp.float32) * 0.1
        b_cla = jax.random.normal(kbc, (C_OUT, 1), dtype=jnp.float32) * 0.1
        return x, w_att, b_att, w_cla, b_cla

    cast = lambda a: a.astype(jnp.bfloat16).astype(jnp.float32)
    f32 = lambda a: np.asarray(a.astype(jnp.float32))

    C_IN, C_OUT, T = 8, 4, 16

    # --- Test 1: f32 outputs (PyTorch-parity dtype), sigmoid head, block_b=1 path.
    x, w_att, b_att, w_cla, b_cla = make_inputs(2, C_IN, C_OUT, T)
    pooled, norm_att, cla = att_block(x, w_att, b_att, w_cla, b_cla,
                                      activation='sigmoid')
    jax.block_until_ready((pooled, norm_att, cla))

    # 1a) Reference whose matmul inputs are bf16-rounded (matches kernel MXU path).
    mp, ma, mc = att_block_reference(cast(x), cast(w_att), b_att, cast(w_cla),
                                     b_cla, activation='sigmoid')
    np.testing.assert_allclose(f32(pooled), np.asarray(mp), rtol=2e-3, atol=2e-3)
    np.testing.assert_allclose(f32(norm_att), np.asarray(ma), rtol=2e-3, atol=2e-3)
    np.testing.assert_allclose(f32(cla), np.asarray(mc), rtol=2e-3, atol=2e-3)

    # 1b) Full-f32 reference (PyTorch semantics); loose tolerance for bf16 matmul.
    fp, fa, fc = att_block_reference(x, w_att, b_att, w_cla, b_cla,
                                     activation='sigmoid')
    np.testing.assert_allclose(f32(pooled), np.asarray(fp), rtol=5e-2, atol=5e-2)
    np.testing.assert_allclose(f32(norm_att), np.asarray(fa), rtol=5e-2, atol=5e-2)
    np.testing.assert_allclose(f32(cla), np.asarray(fc), rtol=5e-2, atol=5e-2)

    # --- Test 2: bf16 outputs (halved HBM writes), linear head, block_b>1
    #     (exercises the rolled fori_loop path; nb stays >= 2 for megacore).
    x2, w_att, b_att, w_cla, b_cla = make_inputs(8, C_IN, C_OUT, T)
    pooled2, norm_att2, cla2 = att_block(x2, w_att, b_att, w_cla, b_cla,
                                         activation='linear',
                                         out_dtype=jnp.bfloat16)
    jax.block_until_ready((pooled2, norm_att2, cla2))

    mp2, ma2, mc2 = att_block_reference(cast(x2), cast(w_att), b_att, cast(w_cla),
                                        b_cla, activation='linear')
    np.testing.assert_allclose(f32(pooled2), np.asarray(mp2), rtol=2e-3, atol=2e-3)
    np.testing.assert_allclose(f32(norm_att2), np.asarray(ma2), rtol=2e-2, atol=2e-2)
    np.testing.assert_allclose(f32(cla2), np.asarray(mc2), rtol=2e-2, atol=2e-2)

    print("KERNEL_OK")
</pallas_src>

<mosaic_0001>
module attributes {stable_mosaic.version = 11 : i64} {
  func.func @attblock_kernel(%arg0: i32, %arg1: memref<16x8xbf16, #tpu.memory_space<vmem>>, %arg2: memref<16x1xf32, #tpu.memory_space<vmem>>, %arg3: memref<1x8x16xf32, #tpu.memory_space<vmem>>, %arg4: memref<1x4x1xf32, #tpu.memory_space<vmem>>, %arg5: memref<1x4x16xf32, #tpu.memory_space<vmem>>, %arg6: memref<1x4x16xf32, #tpu.memory_space<vmem>>) attributes {dimension_semantics = [#tpu.dimension_semantics<parallel>], iteration_bounds = array<i64: 2>, scalar_prefetch = 0 : i64, scratch_operands = 0 : i64, tpu.core_type = #tpu.core_type<tc>, window_params = [{pipeline_mode = #tpu.pipeline_mode<synchronous>, transform_indices = @transform_0, window_bounds = array<i64: 16, 8>}, {pipeline_mode = #tpu.pipeline_mode<synchronous>, transform_indices = @transform_1, window_bounds = array<i64: 16, 1>}, {transform_indices = @transform_2, window_bounds = array<i64: 1, 8, 16>}, {transform_indices = @transform_3, window_bounds = array<i64: 1, 4, 1>}, {transform_indices = @transform_4, window_bounds = array<i64: 1, 4, 16>}, {transform_indices = @transform_5, window_bounds = array<i64: 1, 4, 16>}]} {
    %c0 = arith.constant 0 : index
    %c0_0 = arith.constant 0 : index
    %0 = vector.load %arg1[%c0, %c0_0] : memref<16x8xbf16, #tpu.memory_space<vmem>>, vector<16x8xbf16>
    %c0_1 = arith.constant 0 : index
    %c0_2 = arith.constant 0 : index
    %1 = vector.load %arg2[%c0_1, %c0_2] : memref<16x1xf32, #tpu.memory_space<vmem>>, vector<16x1xf32>
    %c0_3 = arith.constant 0 : index
    %c0_4 = arith.constant 0 : index
    %c0_5 = arith.constant 0 : index
    %2 = vector.load %arg3[%c0_3, %c0_4, %c0_5] : memref<1x8x16xf32, #tpu.memory_space<vmem>>, vector<1x8x16xf32>
    %3 = vector.shape_cast %2 : vector<1x8x16xf32> to vector<8x16xf32>
    %4 = arith.truncf %3 : vector<8x16xf32> to vector<8x16xbf16>
    %cst = arith.constant dense<0.000000e+00> : vector<16x16xf32>
    %5 = tpu.matmul %0, %4, %cst {dimension_numbers = #tpu.dot_dimension_numbers<[1], [0], [0], [1], [0, 0, 1, 1], [], []>} : vector<16x8xbf16>, vector<8x16xbf16>, vector<16x16xf32> -> vector<16x16xf32>
    %6 = vector.broadcast %1 : vector<16x1xf32> to vector<16x16xf32>
    %7 = arith.addf %5, %6 : vector<16x16xf32>
    %8 = vector.extract_strided_slice %7 {offsets = [0, 0], sizes = [8, 16], strides = [1, 1]} : vector<16x16xf32> to vector<8x16xf32>
    %cst_6 = arith.constant -1.000000e+01 : f32
    %cst_7 = arith.constant 1.000000e+01 : f32
    %9 = vector.broadcast %cst_6 : f32 to vector<8x16xf32>
    %10 = arith.maximumf %9, %8 : vector<8x16xf32>
    %11 = vector.broadcast %cst_7 : f32 to vector<8x16xf32>
    %12 = arith.minimumf %11, %10 : vector<8x16xf32>
    %13 = vector.extract_strided_slice %7 {offsets = [8, 0], sizes = [8, 16], strides = [1, 1]} : vector<16x16xf32> to vector<8x16xf32>
    %cst_8 = arith.constant dense<0xFF800000> : vector<8xf32>
    %14 = vector.multi_reduction <maximumf>, %12, %cst_8 [1] : vector<8x16xf32> to vector<8xf32>
    %15 = vector.shape_cast %14 : vector<8xf32> to vector<8x1xf32>
    %16 = vector.broadcast %15 : vector<8x1xf32> to vector<8x16xf32>
    %17 = arith.subf %12, %16 : vector<8x16xf32>
    %18 = math.exp %17 : vector<8x16xf32>
    %cst_9 = arith.constant dense<0.000000e+00> : vector<8xf32>
    %19 = vector.multi_reduction <add>, %18, %cst_9 [1] : vector<8x16xf32> to vector<8xf32>
    %20 = vector.shape_cast %19 : vector<8xf32> to vector<8x1xf32>
    %21 = tpu.reciprocal %20 {approx = true} : vector<8x1xf32> -> vector<8x1xf32>
    %22 = vector.broadcast %21 : vector<8x1xf32> to vector<8x16xf32>
    %23 = arith.mulf %18, %22 : vector<8x16xf32>
    %24 = arith.negf %13 : vector<8x16xf32>
    %25 = math.exp %24 : vector<8x16xf32>
    %cst_10 = arith.constant 1.000000e+00 : f32
    %26 = vector.broadcast %cst_10 : f32 to vector<8x16xf32>
    %27 = arith.addf %26, %25 : vector<8x16xf32>
    %28 = arith.divf %26, %27 : vector<8x16xf32>
    %29 = vector.extract_strided_slice %23 {offsets = [0, 0], sizes = [4, 16], strides = [1, 1]} : vector<8x16xf32> to vector<4x16xf32>
    %c0_11 = arith.constant 0 : index
    %c0_12 = arith.constant 0 : index
    %c0_13 = arith.constant 0 : index
    %30 = vector.load %arg5[%c0_11, %c0_12, %c0_13] : memref<1x4x16xf32, #tpu.memory_space<vmem>>, vector<1x4x16xf32>
    %31 = vector.shape_cast %30 : vector<1x4x16xf32> to vector<4x16xf32>
    %32 = vector.shape_cast %29 : vector<4x16xf32> to vector<1x4x16xf32>
    tpu.vector_store %arg5[%c0_11, %c0_12, %c0_13], %32 {strides = array<i32>} : memref<1x4x16xf32, #tpu.memory_space<vmem>>, vector<1x4x16xf32>,
    %33 = vector.extract_strided_slice %28 {offsets = [0, 0], sizes = [4, 16], strides = [1, 1]} : vector<8x16xf32> to vector<4x16xf32>
    %c0_14 = arith.constant 0 : index
    %c0_15 = arith.constant 0 : index
    %c0_16 = arith.constant 0 : index
    %34 = vector.load %arg6[%c0_14, %c0_15, %c0_16] : memref<1x4x16xf32, #tpu.memory_space<vmem>>, vector<1x4x16xf32>
    %35 = vector.shape_cast %34 : vector<1x4x16xf32> to vector<4x16xf32>
    %36 = vector.shape_cast %33 : vector<4x16xf32> to vector<1x4x16xf32>
    tpu.vector_store %arg6[%c0_14, %c0_15, %c0_16], %36 {strides = array<i32>} : memref<1x4x16xf32, #tpu.memory_space<vmem>>, vector<1x4x16xf32>,
    %37 = arith.mulf %23, %28 : vector<8x16xf32>
    %cst_17 = arith.constant dense<0.000000e+00> : vector<8xf32>
    %38 = vector.multi_reduction <add>, %37, %cst_17 [1] : vector<8x16xf32> to vector<8xf32>
    %39 = vector.shape_cast %38 : vector<8xf32> to vector<8x1xf32>
    %40 = vector.extract_strided_slice %39 {offsets = [0, 0], sizes = [4, 1], strides = [1, 1]} : vector<8x1xf32> to vector<4x1xf32>
    %c0_18 = arith.constant 0 : index
    %c0_19 = arith.constant 0 : index
    %c0_20 = arith.constant 0 : index
    %41 = vector.load %arg4[%c0_18, %c0_19, %c0_20] : memref<1x4x1xf32, #tpu.memory_space<vmem>>, vector<1x4x1xf32>
    %42 = vector.shape_cast %41 : vector<1x4x1xf32> to vector<4x1xf32>
    %43 = vector.shape_cast %40 : vector<4x1xf32> to vector<1x4x1xf32>
    tpu.vector_store %arg4[%c0_18, %c0_19, %c0_20], %43 {strides = array<i32>} : memref<1x4x1xf32, #tpu.memory_space<vmem>>, vector<1x4x1xf32>,
    return
  }
  func.func @transform_0(%arg0: i32) -> (i32, i32) {
    %c0_i32 = arith.constant 0 : i32
    %c0_i32_0 = arith.constant 0 : i32
    %c0_i32_1 = arith.constant 0 : i32
    return %c0_i32, %c0_i32_0 : i32, i32
  }
  func.func @transform_1(%arg0: i32) -> (i32, i32) {
    %c0_i32 = arith.constant 0 : i32
    %c0_i32_0 = arith.constant 0 : i32
    %c0_i32_1 = arith.constant 0 : i32
    return %c0_i32, %c0_i32_0 : i32, i32
  }
  func.func @transform_2(%arg0: i32) -> (i32, i32, i32) {
    %c0_i32 = arith.constant 0 : i32
    %c0_i32_0 = arith.constant 0 : i32
    %c0_i32_1 = arith.constant 0 : i32
    return %arg0, %c0_i32, %c0_i32_0 : i32, i32, i32
  }
  func.func @transform_3(%arg0: i32) -> (i32, i32, i32) {
    %c0_i32 = arith.constant 0 : i32
    %c0_i32_0 = arith.constant 0 : i32
    %c0_i32_1 = arith.constant 0 : i32
    return %arg0, %c0_i32, %c0_i32_0 : i32, i32, i32
  }
  func.func @transform_4(%arg0: i32) -> (i32, i32, i32) {
    %c0_i32 = arith.constant 0 : i32
    %c0_i32_0 = arith.constant 0 : i32
    %c0_i32_1 = arith.constant 0 : i32
    return %arg0, %c0_i32, %c0_i32_0 : i32, i32, i32
  }
  func.func @transform_5(%arg0: i32) -> (i32, i32, i32) {
    %c0_i32 = arith.constant 0 : i32
    %c0_i32_0 = arith.constant 0 : i32
    %c0_i32_1 = arith.constant 0 : i32
    return %arg0, %c0_i32, %c0_i32_0 : i32, i32, i32
  }
}

</mosaic_0001>

<llo_original>
// kernel: tpu_custom_call.1
$region0: #{tpu_custom_call.1}
  #allocation0 [shape = 'u32[]', space=smem, size = 0x4, offset = 0x4, fixed_abs, tag = 'smem constant byte address 0x4 - core index']
  #allocation1 [shape = 'u32[72,128]{1,0:T(1,128)}', space=vmem, size = 0x9000, scoped, tag = 'internal scratch']
  %s0 = inlined_call_operand.vmem [shape: bf16[16,8], index: 0, kind: input, shape index: {}]
  %s1 = inlined_call_operand.vmem [shape: f32[16,1], index: 1, kind: input, shape index: {}]
  %s2 = inlined_call_operand.vmem [shape: f32[2,8,16], index: 2, kind: input, shape index: {}]
  %s3 = inlined_call_operand.vmem [shape: f32[2,4,1], index: 3, kind: output, shape index: {0}]
  %s4 = inlined_call_operand.hbm [shape: f32[2,4,16], index: 4, kind: output, shape index: {1}]
  %s5 = inlined_call_operand.hbm [shape: f32[2,4,16], index: 5, kind: output, shape index: {2}]
  %6 = xla_tuple %s3, %s4, %s5
  %s7 = sld [smem:[#allocation0]]
  $region61: #{tpu_custom_call.1} parent=0
    _
  %s9 = ssub.s32 1, %s7
  %s10 = scalar_select 0, %s9, %s7
  $region1: #{tpu_custom_call.1} parent=0
    #allocation2 [shape = 'u8[4096]{0}', space=vmem, size = 0x1000, scoped, tag = 'output window, operand 1']
    #allocation3 [shape = 's32[2]{0}', space=sflag, size = 0x8, scoped, tag = 'scoped memory for tpu_custom_call.1']
    #allocation4 [shape = 'u8[4096]{0}', space=vmem, size = 0x1000, scoped, tag = 'output window, operand 2']
    #allocation5 [shape = 's32[2]{0}', space=sflag, size = 0x8, scoped, tag = 'scoped memory for tpu_custom_call.1']
    %11 = vsyncpa [#allocation3], 0
    %s12 = scalar_lea.sflag [#allocation3], 1
    %13 = vsyncpa %s12, 0
    %14 = vsyncpa [#allocation5], 0
    %s15 = scalar_lea.sflag [#allocation5], 1
    %16 = vsyncpa %s15, 0
    loop: start=0, step=1, limit=4
    $region2: #{tpu_custom_call.1} parent=1 // loop_pre_header
      _
    $region3: #{tpu_custom_call.1} parent=1 // loop_header
      %s18 = sphi 0, %s22
      %p19 = scmp.ge.s32.totalorder %s18, 4
      %s26 = sphi 0, %s26
      %s28 = sphi 0, %s26
      %s29 = sphi 0, %s28
      %s43 = sphi 0, %s29
      %s47 = sphi 0, %s47
      %s49 = sphi 0, %s47
      %s50 = sphi 0, %s49
      %s64 = sphi 0, %s50
      %s70 = sphi 0, %s72
      %s73 = sphi 0, %s70
      %s74 = sphi 0, %s73
      %s90 = sphi 0, %s74
      %s96 = sphi 0, %s98
      %s99 = sphi 0, %s96
      %s100 = sphi 0, %s99
      %s116 = sphi 0, %s100
      %s122 = sphi 0, %s124
      %s125 = sphi 0, %s122
      %s126 = sphi 0, %s125
      %s142 = sphi 0, %s126
      %s148 = sphi 0, %s150
      %s151 = sphi 0, %s148
      %s152 = sphi 0, %s151
      %s168 = sphi 0, %s152
    $region4: #{tpu_custom_call.1} parent=1 // loop_header_branch
      %21 = sbr.rel (%p19) target = $region8
    $region5: #{tpu_custom_call.1} parent=1 // loop_body
      %s23 = ssub.s32 %s18, 1
      %s24 = ssub.s32 %s18, 2
      %s25 = sadd.s32 %s18, 1
      %s27 = sadd.s32 %s26, 1
      %p30 = scmp.eq.s32.totalorder %s18, 1
      %p31 = scmp.ne.s32.totalorder %s26, %s28
      %p32 = scmp.eq.s32.totalorder %s18, 0
      %p33 = por %p31, %p32
      %p34 = scmp.ne.s32.totalorder %s26, %s28
      %p35 = scmp.eq.s32.totalorder %s23, 1
      %p36 = por %p34, %p35
      %p37 = scmp.ne.s32.totalorder %s28, %s29
      %p38 = scmp.eq.s32.totalorder %s23, 0
      %p39 = por %p37, %p38
      %p40 = scmp.ne.s32.totalorder %s28, %s29
      %p41 = scmp.eq.s32.totalorder %s24, 1
      %p42 = por %p40, %p41
      %p44 = scmp.ne.s32.totalorder %s29, %s43
      %p45 = scmp.eq.s32.totalorder %s24, 0
      %p46 = por %p44, %p45
      %s48 = sadd.s32 %s47, 1
      %p51 = scmp.eq.s32.totalorder %s18, 1
      %p52 = scmp.ne.s32.totalorder %s47, %s49
      %p53 = scmp.eq.s32.totalorder %s18, 0
      %p54 = por %p52, %p53
      %p55 = scmp.ne.s32.totalorder %s47, %s49
      %p56 = scmp.eq.s32.totalorder %s23, 1
      %p57 = por %p55, %p56
      %p58 = scmp.ne.s32.totalorder %s49, %s50
      %p59 = scmp.eq.s32.totalorder %s23, 0
      %p60 = por %p58, %p59
      %p61 = scmp.ne.s32.totalorder %s49, %s50
      %p62 = scmp.eq.s32.totalorder %s24, 1
      %p63 = por %p61, %p62
      %p65 = scmp.ne.s32.totalorder %s50, %s64
      %p66 = scmp.eq.s32.totalorder %s24, 0
      %p67 = por %p65, %p66
      %s68 = ssub.s32 %s18, %s25
      %p69 = scmp.eq.s32.totalorder %s68, 0
      %s71 = sadd.s32 %s70, 1
      %s72 = scalar_select %p69, %s70, %s71
      %p75 = pneg %p69
      %p76 = scmp.eq.s32.totalorder %s18, 1
      %p77 = por %p75, %p76
      %p78 = scmp.ne.s32.totalorder %s70, %s73
      %p79 = scmp.eq.s32.totalorder %s18, 0
      %p80 = por %p78, %p79
      %p81 = scmp.ne.s32.totalorder %s70, %s73
      %p82 = scmp.eq.s32.totalorder %s23, 1
      %p83 = por %p81, %p82
      %p84 = scmp.ne.s32.totalorder %s73, %s74
      %p85 = scmp.eq.s32.totalorder %s23, 0
      %p86 = por %p84, %p85
      %p87 = scmp.ne.s32.totalorder %s73, %s74
      %p88 = scmp.eq.s32.totalorder %s24, 1
      %p89 = por %p87, %p88
      %p91 = scmp.ne.s32.totalorder %s74, %s90
      %p92 = scmp.eq.s32.totalorder %s24, 0
      %p93 = por %p91, %p92
      %s94 = ssub.s32 %s18, %s25
      %p95 = scmp.eq.s32.totalorder %s94, 0
      %s97 = sadd.s32 %s96, 1
      %s98 = scalar_select %p95, %s96, %s97
      %p101 = pneg %p95
      %p102 = scmp.eq.s32.totalorder %s18, 1
      %p103 = por %p101, %p102
      %p104 = scmp.ne.s32.totalorder %s96, %s99
      %p105 = scmp.eq.s32.totalorder %s18, 0
      %p106 = por %p104, %p105
      %p107 = scmp.ne.s32.totalorder %s96, %s99
      %p108 = scmp.eq.s32.totalorder %s23, 1
      %p109 = por %p107, %p108
      %p110 = scmp.ne.s32.totalorder %s99, %s100
      %p111 = scmp.eq.s32.totalorder %s23, 0
      %p112 = por %p110, %p111
      %p113 = scmp.ne.s32.totalorder %s99, %s100
      %p114 = scmp.eq.s32.totalorder %s24, 1
      %p115 = por %p113, %p114
      %p117 = scmp.ne.s32.totalorder %s100, %s116
      %p118 = scmp.eq.s32.totalorder %s24, 0
      %p119 = por %p117, %p118
      %s120 = ssub.s32 %s18, %s25
      %p121 = scmp.eq.s32.totalorder %s120, 0
      %s123 = sadd.s32 %s122, 1
      %s124 = scalar_select %p121, %s122, %s123
      %p127 = pneg %p121
      %p128 = scmp.eq.s32.totalorder %s18, 1
      %p129 = por %p127, %p128
      %p130 = scmp.ne.s32.totalorder %s122, %s125
      %p131 = scmp.eq.s32.totalorder %s18, 0
      %p132 = por %p130, %p131
      %p133 = scmp.ne.s32.totalorder %s122, %s125
      %p134 = scmp.eq.s32.totalorder %s23, 1
      %p135 = por %p133, %p134
      %p136 = scmp.ne.s32.totalorder %s125, %s126
      %p137 = scmp.eq.s32.totalorder %s23, 0
      %p138 = por %p136, %p137
      %p139 = scmp.ne.s32.totalorder %s125, %s126
      %p140 = scmp.eq.s32.totalorder %s24, 1
      %p141 = por %p139, %p140
      %p143 = scmp.ne.s32.totalorder %s126, %s142
      %p144 = scmp.eq.s32.totalorder %s24, 0
      %p145 = por %p143, %p144
      %s146 = ssub.s32 %s18, %s25
      %p147 = scmp.eq.s32.totalorder %s146, 0
      %s149 = sadd.s32 %s148, 1
      %s150 = scalar_select %p147, %s148, %s149
      %p153 = pneg %p147
      %p154 = scmp.eq.s32.totalorder %s18, 1
      %p155 = por %p153, %p154
      %p156 = scmp.ne.s32.totalorder %s148, %s151
      %p157 = scmp.eq.s32.totalorder %s18, 0
      %p158 = por %p156, %p157
      %p159 = scmp.ne.s32.totalorder %s148, %s151
      %p160 = scmp.eq.s32.totalorder %s23, 1
      %p161 = por %p159, %p160
      %p162 = scmp.ne.s32.totalorder %s151, %s152
      %p163 = scmp.eq.s32.totalorder %s23, 0
      %p164 = por %p162, %p163
      %p165 = scmp.ne.s32.totalorder %s151, %s152
      %p166 = scmp.eq.s32.totalorder %s24, 1
      %p167 = por %p165, %p166
      %p169 = scmp.ne.s32.totalorder %s152, %s168
      %p170 = scmp.eq.s32.totalorder %s24, 0
      %p171 = por %p169, %p170
      %p172 = scmp.le.s32.totalorder 1, %s18
      %p173 = scmp.lt.s32.totalorder %s18, 3
      %p174 = pnand %p172, %p173
      %p175 = pneg %p174
      // Predicated region
      $region9: #{tpu_custom_call.1} parent=5 // pred_check
        _
      $region10: #{tpu_custom_call.1} parent=5 // pred_check_branch
        %177 = sbr.rel (%p174) target = $region12
      $region11: #{tpu_custom_call.1} parent=5 // pred_region
        %s178 = ssub.s32 %s18, 1
        // Predicated region
        $region13: #{tpu_custom_call.1} parent=11 // pred_check
          %p179 = pneg %p39
        $region14: #{tpu_custom_call.1} parent=11 // pred_check_branch
          %181 = sbr.rel (%p179) target = $region16
        $region15: #{tpu_custom_call.1} parent=11 // pred_region
          _
        $region16: #{tpu_custom_call.1} parent=11 // pred_fallthru
          _
        // Predicated region
        $region17: #{tpu_custom_call.1} parent=11 // pred_check
          %p182 = pneg %p60
        $region18: #{tpu_custom_call.1} parent=11 // pred_check_branch
          %184 = sbr.rel (%p182) target = $region20
        $region19: #{tpu_custom_call.1} parent=11 // pred_region
          _
        $region20: #{tpu_custom_call.1} parent=11 // pred_fallthru
          _
      $region12: #{tpu_custom_call.1} parent=5 // pred_fallthru
        _
      %p185 = scmp.lt.s32.totalorder %s18, 2
      // Predicated region
      $region21: #{tpu_custom_call.1} parent=5 // pred_check
        %p186 = pneg %p185
      $region22: #{tpu_custom_call.1} parent=5 // pred_check_branch
        %188 = sbr.rel (%p186) target = $region24
      $region23: #{tpu_custom_call.1} parent=5 // pred_region
        // Predicated region
        $region25: #{tpu_custom_call.1} parent=23 // pred_check
          %p189 = pneg %p80
        $region26: #{tpu_custom_call.1} parent=23 // pred_check_branch
          %191 = sbr.rel (%p189) target = $region28
        $region27: #{tpu_custom_call.1} parent=23 // pred_region
          %p192 = scmp.lt.s32.totalorder %s18, 1
          %s193 = scalar_select %p192, %s18, 1
          %s194 = smul.addr %s193, 8
          %s195 = scalar_lea.vmem %s2, %s194
        $region28: #{tpu_custom_call.1} parent=23 // pred_fallthru
          _
      $region24: #{tpu_custom_call.1} parent=5 // pred_fallthru
        _
      %p196 = scmp.le.s32.totalorder 1, %s18
      %p197 = scmp.lt.s32.totalorder %s18, 3
      %p198 = pnand %p196, %p197
      %p199 = pneg %p198
      // Predicated region
      $region29: #{tpu_custom_call.1} parent=5 // pred_check
        _
      $region30: #{tpu_custom_call.1} parent=5 // pred_check_branch
        %201 = sbr.rel (%p198) target = $region32
      $region31: #{tpu_custom_call.1} parent=5 // pred_region
        %s202 = ssub.s32 %s18, 1
        %p203 = pneg %p39
        %p204 = pneg %p36
        %p205 = pneg %p60
        %p206 = pneg %p57
        %p207 = scmp.lt.s32.totalorder %s23, 1
        %s208 = scalar_select %p207, %s23, 1
        %s209 = smul.addr %s208, 8
        %s210 = scalar_lea.vmem %s2, %s209
        %p211 = pneg %p86
        %p212 = pneg %p83
        %p213 = pneg %p112
        %p214 = pneg %p109
        %p215 = scmp.lt.s32.totalorder %s23, 1
        %s216 = scalar_select %p215, %s23, 1
        %s217 = smul.addr %s216, 4
        %s218 = scalar_lea.vmem %s3, %s217
        %p219 = pneg %p138
        %p220 = pneg %p135
        %s221 = sand.u32 %s125, 1
        %s222 = scalar_lea.sflag [#allocation3], %s221
        %s223 = sand.u32 %s125, 1
        %s224 = smul.addr %s223, 4
        %s225 = scalar_lea.vmem [#allocation2], %s224
        %p226 = pneg %p164
        %p227 = pneg %p161
        %s228 = sand.u32 %s151, 1
        %s229 = scalar_lea.sflag [#allocation5], %s228
        %s230 = sand.u32 %s151, 1
        %s231 = smul.addr %s230, 4
        %s232 = scalar_lea.vmem [#allocation4], %s231
        %p233 = scmp.lt.s32.totalorder %s23, 1
        %s234 = scalar_select %p233, %s23, 1
        %s235 = smul.addr %s234, 8
        %s236 = scalar_lea.vmem %s2, %s235
        %p237 = scmp.lt.s32.totalorder %s23, 1
        %s238 = scalar_select %p237, %s23, 1
        %s239 = smul.addr %s238, 4
        %s240 = scalar_lea.vmem %s3, %s239
        %v242 = vld [vmem:[%s0] sm:$0xf]
        %v243 = vld [vmem:[%s0 + $0x4] sm:$0xf]
        %v244 = vld [vmem:[%s1] sm:$0xff]
        %v245 = vld [vmem:[%s1 + $0x8] sm:$0xff]
        %v246 = vld [vmem:[%s236] sm:$0xff]
        %v247 = vpack.c.bf16 %v246, %v246
        %249 = vset.pattern.permute.xlu0 0
        %250 = vperm.xlu0 %249, %v244
        %v251 = vpop.permute.xlu0 %250
        %254 = vset.pattern.permute.xlu0 0
        %255 = vperm.xlu0 %254, %v245
        %v256 = vpop.permute.xlu0 %255
        %v260 = vunpack.c.l.b16 %v242
        %v261 = vunpack.c.l.b16 %v243
        %v262 = vpack.c.b16 %v261, %v260
        %vm263 = vcmask 64512
        %v265 = vsel %vm263, %v262, 0
        %vm267 = vcmask 1043456
        %v269 = vsel %vm267, %v247, 0
        %271 = vmatpush.bf16.msra.mxu0 0
        %272 = vmatpush.bf16.msra.mxu0 0
        %273 = vmatpush.bf16.msra.mxu0 0
        %274 = vmatpush.bf16.msra.mxu0 0
        %275 = vmatpush.bf16.msra.mxu0 0
        %276 = vmatpush.bf16.msra.mxu0 0
        %277 = vmatpush.bf16.msra.mxu0 0
        %278 = vmatpush.bf16.msra.mxu0 %v269
        %279 = vmatmul.bf16.gmra.mxu0 %v265
        %v280 = vpop.f32.mrf.mxu0
        %v281 = vadd.f32 %v251, %v280
        %v282 = vpop.f32.mrf.mxu0
        %v283 = vadd.f32 %v256, %v282
        %284 = vdwg.mxu0
        %v285 = vmax.f32 %v281, -10.0
        %v286 = vmin.f32 %v285, 10.0
        %vm287 = vcmask 130048
        %v288 = vsel %vm287, %v286, -inf
        %289 = vmax.xlane.f32.xlu0 %v288
        %v290 = vpop.xlane.xlu0 %289
        %v291 = vsub.f32 %v286, %v290
        %v292 = vmul.f32 %v291, 1.442695
        %v293 = vpow.pop %v292
        %v294 = vsel %vm287, %v293, 0.0
        %295 = vadd.xlane.f32.xlu0 %v294
        %v296 = vpop.xlane.xlu0 %295
        %v297 = vrcp.pop %v296
        %v298 = vmul.f32 %v293, %v297
        %v299 = vxor.u32 %v283, 2147483648
        %v300 = vmul.f32 %v299, 1.442695
        %v301 = vpow.pop %v300
        %v302 = vadd.f32 %v301, 1.0
        %v303 = vrcp.pop %v302
        %v304 = vmul.f32 %v302, %v303
        %v305 = vsub.f32 1.0, %v304
        %v306 = vmul.f32 %v303, %v305
        %v307 = vadd.f32 %v303, %v306
        %vm308 = vweird.f32 %v302
        %vm309 = vweird.f32 %v303
        %vm310 = vmor %vm308, %vm309
        %v311 = vsel %vm310, %v303, %v307
        %v312 = vand.u32 2147483647, %v302
        %vm313 = vcmp.eq.f32.partialorder %v312, 8.507059e+37
        %v314 = vand.u32 %v302, 2147483648
        %v315 = vor.u32 1.1754944e-38, %v314
        %v316 = vsel %vm313, %v315, %v311
        %v317 = vmul.f32 1.0, %v316
        %vm318 = vcmask 125952
        %319 = vst.msk [vmem:[%s225] sm:$0xf] %vm318, %v298
        %320 = vst.msk [vmem:[%s232] sm:$0xf] %vm318, %v317
        %v321 = vmul.f32 %v298, %v317
        %v322 = vsel %vm287, %v321, 0.0
        %323 = vadd.xlane.f32.xlu0 %v322
        %v324 = vpop.xlane.xlu0 %323
        %vm325 = vcmask 3072
        %326 = vst.msk [vmem:[%s240] sm:$0xf] %vm325, %v324
        %p327 = scmp.lt.s32.totalorder %s23, 1
        %s328 = scalar_select %p327, %s23, 1
        %s329 = smul.addr %s328, 4
        %s330 = scalar_lea.vmem %s3, %s329
        %s331 = sand.u32 %s125, 1
        %s332 = scalar_lea.sflag [#allocation3], %s331
        %s333 = sand.u32 %s125, 1
        %s334 = smul.addr %s333, 4
        %s335 = scalar_lea.vmem [#allocation2], %s334
        %s336 = sand.u32 %s151, 1
        %s337 = scalar_lea.sflag [#allocation5], %s336
        %s338 = sand.u32 %s151, 1
        %s339 = smul.addr %s338, 4
        %s340 = scalar_lea.vmem [#allocation4], %s339
        // Predicated region
        $region33: #{tpu_custom_call.1} parent=31 // pred_check
          %p341 = pneg %p109
        $region34: #{tpu_custom_call.1} parent=31 // pred_check_branch
          %343 = sbr.rel (%p341) target = $region36
        $region35: #{tpu_custom_call.1} parent=31 // pred_region
          _
        $region36: #{tpu_custom_call.1} parent=31 // pred_fallthru
          _
        // Predicated region
        $region37: #{tpu_custom_call.1} parent=31 // pred_check
          %p344 = pneg %p135
        $region38: #{tpu_custom_call.1} parent=31 // pred_check_branch
          %346 = sbr.rel (%p344) target = $region40
        $region39: #{tpu_custom_call.1} parent=31 // pred_region
          %348 = vsyncadd %s332, 0
          %s349 = smul.addr %s23, 4
          %s350 = scalar_lea.hbm %s4, %s349
          %s352 = sshll.u32 %s335, 4
          %s353 = int_to_ptr.vmem [resolvable:$true] %s352
          %s354 = sshll.u32 %s350, 4
          %s355 = int_to_ptr.hbm [resolvable:$true] %s354
          %357 = dma.vmem_to_hbm [thread:$0]  %s353, 64, %s355, %s332
        $region40: #{tpu_custom_call.1} parent=31 // pred_fallthru
          _
        // Predicated region
        $region41: #{tpu_custom_call.1} parent=31 // pred_check
          %p358 = pneg %p161
        $region42: #{tpu_custom_call.1} parent=31 // pred_check_branch
          %360 = sbr.rel (%p358) target = $region44
        $region43: #{tpu_custom_call.1} parent=31 // pred_region
          %362 = vsyncadd %s337, 0
          %s363 = smul.addr %s23, 4
          %s364 = scalar_lea.hbm %s5, %s363
          %s366 = sshll.u32 %s340, 4
          %s367 = int_to_ptr.vmem [resolvable:$true] %s366
          %s368 = sshll.u32 %s364, 4
          %s369 = int_to_ptr.hbm [resolvable:$true] %s368
          %371 = dma.vmem_to_hbm [thread:$0]  %s367, 64, %s369, %s337
        $region44: #{tpu_custom_call.1} parent=31 // pred_fallthru
          _
      $region32: #{tpu_custom_call.1} parent=5 // pred_fallthru
        _
      %p372 = scmp.le.s32.totalorder 2, %s18
      // Predicated region
      $region45: #{tpu_custom_call.1} parent=5 // pred_check
        %p373 = pneg %p372
      $region46: #{tpu_custom_call.1} parent=5 // pred_check_branch
        %375 = sbr.rel (%p373) target = $region48
      $region47: #{tpu_custom_call.1} parent=5 // pred_region
        %s376 = ssub.s32 %s18, 2
        // Predicated region
        $region49: #{tpu_custom_call.1} parent=47 // pred_check
          %p377 = pneg %p115
        $region50: #{tpu_custom_call.1} parent=47 // pred_check_branch
          %379 = sbr.rel (%p377) target = $region52
        $region51: #{tpu_custom_call.1} parent=47 // pred_region
          %p380 = scmp.lt.s32.totalorder %s24, 1
          %s381 = scalar_select %p380, %s24, 1
          %s382 = smul.addr %s381, 4
          %s383 = scalar_lea.vmem %s3, %s382
        $region52: #{tpu_custom_call.1} parent=47 // pred_fallthru
          _
        // Predicated region
        $region53: #{tpu_custom_call.1} parent=47 // pred_check
          %p384 = pneg %p141
        $region54: #{tpu_custom_call.1} parent=47 // pred_check_branch
          %386 = sbr.rel (%p384) target = $region56
        $region55: #{tpu_custom_call.1} parent=47 // pred_region
          %s387 = sand.u32 %s126, 1
          %s388 = scalar_lea.sflag [#allocation3], %s387
          %s389 = sand.u32 %s126, 1
          %s390 = smul.addr %s389, 4
          %s391 = scalar_lea.vmem [#allocation2], %s390
          %393 = dma.done %s388, 64
        $region56: #{tpu_custom_call.1} parent=47 // pred_fallthru
          _
        // Predicated region
        $region57: #{tpu_custom_call.1} parent=47 // pred_check
          %p394 = pneg %p167
        $region58: #{tpu_custom_call.1} parent=47 // pred_check_branch
          %396 = sbr.rel (%p394) target = $region60
        $region59: #{tpu_custom_call.1} parent=47 // pred_region
          %s397 = sand.u32 %s152, 1
          %s398 = scalar_lea.sflag [#allocation5], %s397
          %s399 = sand.u32 %s152, 1
          %s400 = smul.addr %s399, 4
          %s401 = scalar_lea.vmem [#allocation4], %s400
          %403 = dma.done %s398, 64
        $region60: #{tpu_custom_call.1} parent=47 // pred_fallthru
          _
      $region48: #{tpu_custom_call.1} parent=5 // pred_fallthru
        _
    $region6: #{tpu_custom_call.1} parent=1 // loop_footer
      %s22 = sadd.s32 1, %s18
    $region7: #{tpu_custom_call.1} parent=1 // loop_footer_branch
      %17 = sbr.rel target = $region3
    $region8: #{tpu_custom_call.1} parent=1 // loop_exit
      _
    %404 = vsyncpa [#allocation3], 1
    %s405 = scalar_lea.sflag [#allocation3], 1
    %406 = vsyncpa %s405, 1
    %407 = vsyncpa [#allocation5], 1
    %s408 = scalar_lea.sflag [#allocation5], 1
    %409 = vsyncpa %s408, 1

</llo_original>
